<compile_context>
chip_gen: v5e
topology: v5e:2x2
jax: 0.10.0
libtpu: 0.0.40
codegen_flags: <defaults>
</compile_context>

<pallas_src>
import functools

import jax
import jax.numpy as jnp
import numpy as np
from jax.experimental import pallas as pl
from jax.experimental.pallas import tpu as pltpu

LANE = 128


def _round_up(x, m):
    return ((x + m - 1) // m) * m


def _vmem_limit_bytes():
    """Generation-aware scoped-VMEM budget (v5e/v6e: ~96 MiB, v7x: ~48 MiB)."""
    try:
        cap = int(pltpu.get_tpu_info().vmem_capacity_bytes)
        return max(int(min(cap - 16 * 1024 * 1024, 96 * 1024 * 1024)),
                   32 * 1024 * 1024)
    except Exception:
        # Non-TPU / interpret backends: value is unused there.
        return 32 * 1024 * 1024


VMEM_LIMIT_BYTES = _vmem_limit_bytes()


# ----------------------------------------------------------------------------
# Fused kernel: aggregation chain -> wide matmul -> sliced ReLU -> BatchNorm1d
# One grid step per graph path (0 = g, 1 = lg).
# ----------------------------------------------------------------------------
def _lgcn_fused_kernel(a_ref, h_ref, deg_ref, p_ref, ho_ref, bnw_ref,
                       w_ref, b_ref, gamma_ref, beta_ref,
                       o_ref, xcat_ref, *, radius, f_pad, split, eps):
    cdt = h_ref.dtype
    a = a_ref[0]          # (N, N) adjacency, VMEM-resident for the whole chain
    h = h_ref[0]          # (N, f_pad)

    # --- term assembly into the VMEM scratch X_cat (never touches HBM) -------
    # term order must match prepare_layer_params: hop terms, prev, fuse, deg.
    tmp = h
    col = 0
    for r in range(radius):
        hops = 1 if r == 0 else 2 ** (r - 1)
        for _ in range(hops):
            tmp = jnp.dot(a, tmp, preferred_element_type=jnp.float32).astype(cdt)
        xcat_ref[:, col:col + f_pad] = tmp          # 128-aligned, unmasked stores
        col += f_pad

    xcat_ref[:, col:col + f_pad] = h                # prev term: H itself
    col += f_pad

    dh = (deg_ref[0].astype(jnp.float32) * h.astype(jnp.float32)).astype(cdt)
    xcat_ref[:, col:col + f_pad] = dh               # fuse term: degree * H
    col += f_pad

    ph = jnp.dot(p_ref[0], ho_ref[0], preferred_element_type=jnp.float32).astype(cdt)
    xcat_ref[:, col:col + f_pad] = ph               # deg term: P @ H_other

    # --- all Linear layers as ONE wide MXU matmul, f32 accumulation ----------
    x = jnp.dot(xcat_ref[...], w_ref[0],
                preferred_element_type=jnp.float32) + b_ref[0]

    # torch.cat([relu(x[:out_dim//2]), x[out_dim//2:]]) slices ROWS (nodes).
    row_ids = jax.lax.broadcasted_iota(jnp.int32, (x.shape[0], 1), 0)
    x = jnp.where(row_ids < split, jnp.maximum(x, 0.0), x)

    # BatchNorm1d, training-mode biased batch statistics over VALID rows only.
    # bnw holds 1/n_valid on valid rows and 0 on zero-padded rows.
    w = bnw_ref[0]                                              # (N, 1) f32
    mean = jnp.sum(x * w, axis=0, keepdims=True)
    centered = x - mean
    var = jnp.sum(centered * centered * w, axis=0, keepdims=True)
    xhat = centered * jax.lax.rsqrt(var + eps)
    o_ref[0] = gamma_ref[0] * xhat + beta_ref[0]


# ----------------------------------------------------------------------------
# One-time parameter preparation: pre-transpose, pad to 128 lanes, concatenate
# along K, pre-cast to the compute dtype, stack the g / lg paths.
# ----------------------------------------------------------------------------
def prepare_layer_params(params, *, compute_dtype=jnp.float32, lane=LANE):
    radius = len(params["g_linear"])
    out_dim, in_dim = params["prev_g"][0].shape      # torch W: (out, in)
    f_pad = _round_up(in_dim, lane)
    fo_pad = _round_up(out_dim, lane)

    def pad_wt(wb):
        W, b = wb
        Wt = jnp.zeros((f_pad, fo_pad), jnp.float32).at[:in_dim, :out_dim].set(
            jnp.asarray(W, jnp.float32).T)
        bp = jnp.zeros((fo_pad,), jnp.float32).at[:out_dim].set(
            jnp.asarray(b, jnp.float32))
        return Wt, bp

    def cat(wbs):
        Ws, bs = zip(*(pad_wt(wb) for wb in wbs))
        Wcat = jnp.concatenate(Ws, axis=0).astype(compute_dtype)  # MXU operand dtype
        bsum = sum(bs).reshape(1, fo_pad)                         # epilogue stays f32
        return Wcat, bsum

    # term order must match _lgcn_fused_kernel: radius hops, prev, fuse, deg
    Wg, bg = cat(list(params["g_linear"]) + [params["prev_g"], params["g_fuse"],
                                             params["deg_g"]])
    Wl, bl = cat(list(params["lg_linear"]) + [params["prev_lg"], params["lg_fuse"],
                                              params["deg_lg"]])

    def pad_vec(v, fill):
        return jnp.full((1, fo_pad), fill, jnp.float32).at[0, :out_dim].set(
            jnp.asarray(v, jnp.float32))

    return {
        "W": jnp.stack([Wg, Wl]),                                   # (2, Kcat, Fo)
        "b": jnp.stack([bg, bl]),                                   # (2, 1, Fo) f32
        "gamma": jnp.stack([pad_vec(params["ba_gamma"], 1.0),
                            pad_vec(params["lin_gamma"], 1.0)]),
        "beta": jnp.stack([pad_vec(params["ba_beta"], 0.0),
                           pad_vec(params["lin_beta"], 0.0)]),
    }


# ----------------------------------------------------------------------------
# One-time graph preparation: pad both graphs to a common size, pre-cast to the
# compute dtype, pre-transpose pm_pd, build the masked-BatchNorm row weights.
# ----------------------------------------------------------------------------
def prepare_graph(A_g, A_lg, pm_pd, g_degree, lg_degree, *, compute_dtype=jnp.float32):
    cdt = compute_dtype
    n_g, n_lg = int(A_g.shape[0]), int(A_lg.shape[0])
    n_max = _round_up(max(n_g, n_lg), 8)

    def pad2(x, rows, cols, dtype):
        x = jnp.asarray(x)
        return jnp.zeros((rows, cols), dtype).at[:x.shape[0], :x.shape[1]].set(
            x.astype(dtype))

    A = jnp.stack([pad2(A_g, n_max, n_max, cdt),
                   pad2(A_lg, n_max, n_max, cdt)])
    P = jnp.stack([pad2(pm_pd, n_max, n_max, cdt),
                   pad2(jnp.asarray(pm_pd).T, n_max, n_max, cdt)])
    deg = jnp.stack([pad2(jnp.reshape(g_degree, (-1, 1)), n_max, 1, jnp.float32),
                     pad2(jnp.reshape(lg_degree, (-1, 1)), n_max, 1, jnp.float32)])
    ids = jnp.arange(n_max)[:, None]
    bn_w = jnp.stack([(ids < n_g).astype(jnp.float32) / n_g,
                      (ids < n_lg).astype(jnp.float32) / n_lg])   # (2, n_max, 1)
    return {"A": A, "P": P, "deg": deg, "bn_w": bn_w}


# ----------------------------------------------------------------------------
# LGCN_Layer forward: one fused pallas_call, grid=(2,) parallel over {g, lg}
# ----------------------------------------------------------------------------
@functools.partial(jax.jit, static_argnames=("radius", "out_dim"))
def lgcn_layer_forward(prepared, graph, g_feature, lg_feature, *, radius, out_dim):
    cdt = prepared["W"].dtype
    k_cat = prepared["W"].shape[1]
    fo_pad = prepared["W"].shape[2]
    f_pad = k_cat // (radius + 3)
    n_max = graph["A"].shape[1]
    n_g, n_lg = g_feature.shape[0], lg_feature.shape[0]

    def pad_feat(x):   # zero-pad rows to n_max and the feature dim to 128 lanes
        return jnp.zeros((n_max, f_pad), cdt).at[:x.shape[0], :x.shape[1]].set(
            x.astype(cdt))

    Hg, Hlg = pad_feat(g_feature), pad_feat(lg_feature)
    H = jnp.stack([Hg, Hlg])        # own features per path
    Ho = jnp.stack([Hlg, Hg])       # "other" features per path (for P @ H_other)

    split = out_dim // 2            # feature_size // 2 applied to ROWS, as in the reference
    kern = functools.partial(_lgcn_fused_kernel, radius=radius, f_pad=f_pad,
                             split=split, eps=1e-5)

    out = pl.pallas_call(
        kern,
        out_shape=jax.ShapeDtypeStruct((2, n_max, fo_pad), jnp.float32),
        grid=(2,),   # graph path axis: independent -> "parallel" (dual-TC on v7x)
        in_specs=[
            pl.BlockSpec((1, n_max, n_max), lambda i: (i, 0, 0)),    # A
            pl.BlockSpec((1, n_max, f_pad), lambda i: (i, 0, 0)),    # H
            pl.BlockSpec((1, n_max, 1), lambda i: (i, 0, 0)),        # degree
            pl.BlockSpec((1, n_max, n_max), lambda i: (i, 0, 0)),    # P / P^T
            pl.BlockSpec((1, n_max, f_pad), lambda i: (i, 0, 0)),    # H_other
            pl.BlockSpec((1, n_max, 1), lambda i: (i, 0, 0)),        # BN row weights
            pl.BlockSpec((1, k_cat, fo_pad), lambda i: (i, 0, 0)),   # W_cat
            pl.BlockSpec((1, 1, fo_pad), lambda i: (i, 0, 0)),       # summed bias
            pl.BlockSpec((1, 1, fo_pad), lambda i: (i, 0, 0)),       # gamma
            pl.BlockSpec((1, 1, fo_pad), lambda i: (i, 0, 0)),       # beta
        ],
        out_specs=pl.BlockSpec((1, n_max, fo_pad), lambda i: (i, 0, 0)),
        scratch_shapes=[pltpu.VMEM((n_max, k_cat), cdt)],            # X_cat, VMEM only
        compiler_params=pltpu.CompilerParams(
            dimension_semantics=("parallel",),
            vmem_limit_bytes=VMEM_LIMIT_BYTES),
    )(graph["A"], H, graph["deg"], graph["P"], Ho, graph["bn_w"],
      prepared["W"], prepared["b"], prepared["gamma"], prepared["beta"])

    return out[0, :n_g, :out_dim], out[1, :n_lg, :out_dim]


# ----------------------------------------------------------------------------
# Pure numpy (float64) reference of the original PyTorch forward
# ----------------------------------------------------------------------------
def _ref_forward_np(params, A_g, A_lg, g_feature, lg_feature, g_degree, lg_degree, pm_pd):
    f64 = lambda x: np.asarray(x, dtype=np.float64)
    radius = len(params["g_linear"])
    out_dim = params["prev_g"][0].shape[0]

    def agg(A, h):
        res = []
        tmp = A @ h
        res.append(tmp)
        for i in range(radius - 1):
            for _ in range(2 ** i):
                tmp = A @ tmp
            res.append(tmp)
        return res

    def lin(x, wb):
        return x @ f64(wb[0]).T + f64(wb[1])

    Ag, Alg = f64(A_g), f64(A_lg)
    hg, hlg = f64(g_feature), f64(lg_feature)
    dg, dlg = f64(g_degree), f64(lg_degree)
    P = f64(pm_pd)

    sum_g = sum(lin(f, wb) for wb, f in zip(params["g_linear"], agg(Ag, hg)))
    sum_lg = sum(lin(f, wb) for wb, f in zip(params["lg_linear"], agg(Alg, hlg)))
    g_new = (sum_g + lin(hg, params["prev_g"]) + lin(P @ hlg, params["deg_g"])
             + lin(dg * hg, params["g_fuse"]))
    lg_new = (sum_lg + lin(hlg, params["prev_lg"]) + lin(P.T @ hg, params["deg_lg"])
              + lin(dlg * hlg, params["lg_fuse"]))
    s = out_dim // 2

    def sliced_relu(x):
        y = x.copy()
        y[:s] = np.maximum(y[:s], 0.0)
        return y

    def bn(x, gamma, beta, eps=1e-5):
        m = x.mean(0, keepdims=True)
        v = ((x - m) ** 2).mean(0, keepdims=True)
        return f64(gamma) * (x - m) / np.sqrt(v + eps) + f64(beta)

    return (bn(sliced_relu(g_new), params["ba_gamma"], params["ba_beta"]),
            bn(sliced_relu(lg_new), params["lin_gamma"], params["lin_beta"]))


# ----------------------------------------------------------------------------
# Deterministic parameter / input construction
# ----------------------------------------------------------------------------
def init_linear(key, input_dim, output_dim):
    kw, kb = jax.random.split(key)
    bound = 1.0 / np.sqrt(input_dim)
    W = jax.random.uniform(kw, (output_dim, input_dim), jnp.float32, -bound, bound)
    b = jax.random.uniform(kb, (output_dim,), jnp.float32, -bound, bound)
    return (W, b)


def init_params(key, radius, input_dim, output_dim):
    keys = jax.random.split(key, 6 + 2 * radius)
    return {
        "prev_g": init_linear(keys[0], input_dim, output_dim),
        "prev_lg": init_linear(keys[1], input_dim, output_dim),
        "deg_g": init_linear(keys[2], input_dim, output_dim),
        "deg_lg": init_linear(keys[3], input_dim, output_dim),
        "g_fuse": init_linear(keys[4], input_dim, output_dim),
        "lg_fuse": init_linear(keys[5], input_dim, output_dim),
        "g_linear": [init_linear(keys[6 + i], input_dim, output_dim) for i in range(radius)],
        "lg_linear": [init_linear(keys[6 + radius + i], input_dim, output_dim)
                      for i in range(radius)],
        "ba_gamma": jnp.ones((output_dim,), jnp.float32),
        "ba_beta": jnp.zeros((output_dim,), jnp.float32),
        "lin_gamma": jnp.ones((output_dim,), jnp.float32),
        "lin_beta": jnp.zeros((output_dim,), jnp.float32),
    }


if __name__ == "__main__":
    radius = 2
    input_dim = output_dim = 8
    n_g = 16      # nodes in g
    n_lg = 24     # nodes in the line graph lg (edges of g)

    root = jax.random.PRNGKey(0)
    kp, ka, kl, kpm, kgf, klf = jax.random.split(root, 6)

    params = init_params(kp, radius, input_dim, output_dim)

    A_g = (jax.random.uniform(ka, (n_g, n_g)) < 0.3).astype(jnp.float32)
    A_g = jnp.maximum(A_g, A_g.T) * (1.0 - jnp.eye(n_g, dtype=jnp.float32))
    A_lg = (jax.random.uniform(kl, (n_lg, n_lg)) < 0.3).astype(jnp.float32)
    A_lg = jnp.maximum(A_lg, A_lg.T) * (1.0 - jnp.eye(n_lg, dtype=jnp.float32))
    pm_pd = (jax.random.uniform(kpm, (n_g, n_lg)) < 0.2).astype(jnp.float32)

    g_feature = jax.random.normal(kgf, (n_g, input_dim), jnp.float32)
    lg_feature = jax.random.normal(klf, (n_lg, input_dim), jnp.float32)
    g_degree = jnp.sum(A_g, axis=1, keepdims=True)
    lg_degree = jnp.sum(A_lg, axis=1, keepdims=True)

    ref_g, ref_lg = _ref_forward_np(params, A_g, A_lg, g_feature, lg_feature,
                                    g_degree, lg_degree, pm_pd)

    # f32-operand path: accuracy check (runs on any backend).
    prep32 = prepare_layer_params(params, compute_dtype=jnp.float32)
    graph32 = prepare_graph(A_g, A_lg, pm_pd, g_degree, lg_degree,
                            compute_dtype=jnp.float32)
    out_g32, out_lg32 = lgcn_layer_forward(prep32, graph32, g_feature, lg_feature,
                                           radius=radius, out_dim=output_dim)
    jax.block_until_ready((out_g32, out_lg32))
    assert np.allclose(np.asarray(out_g32), ref_g, atol=5e-2, rtol=5e-2)
    assert np.allclose(np.asarray(out_lg32), ref_lg, atol=5e-2, rtol=5e-2)

    # bf16-operand / f32-accumulate MXU performance path: only exercised on real TPU
    # backends (non-TPU interpret runtimes do not implement BF16xBF16=F32 dots).
    if jax.devices()[0].platform == "tpu":
        prep_bf = prepare_layer_params(params, compute_dtype=jnp.bfloat16)
        graph_bf = prepare_graph(A_g, A_lg, pm_pd, g_degree, lg_degree,
                                 compute_dtype=jnp.bfloat16)
        out_gbf, out_lgbf = lgcn_layer_forward(prep_bf, graph_bf, g_feature, lg_feature,
                                               radius=radius, out_dim=output_dim)
        jax.block_until_ready((out_gbf, out_lgbf))
        assert np.allclose(np.asarray(out_gbf), ref_g, atol=2e-1, rtol=2e-1)
        assert np.allclose(np.asarray(out_lgbf), ref_lg, atol=2e-1, rtol=2e-1)

    print("KERNEL_OK")
</pallas_src>

<mosaic_0001>
module attributes {stable_mosaic.version = 11 : i64} {
  func.func @_lgcn_fused_kernel(%arg0: i32, %arg1: memref<1x24x24xf32, #tpu.memory_space<vmem>>, %arg2: memref<1x24x128xf32, #tpu.memory_space<vmem>>, %arg3: memref<1x24x1xf32, #tpu.memory_space<vmem>>, %arg4: memref<1x24x24xf32, #tpu.memory_space<vmem>>, %arg5: memref<1x24x128xf32, #tpu.memory_space<vmem>>, %arg6: memref<1x24x1xf32, #tpu.memory_space<vmem>>, %arg7: memref<1x640x128xf32, #tpu.memory_space<vmem>>, %arg8: memref<1x1x128xf32, #tpu.memory_space<vmem>>, %arg9: memref<1x1x128xf32, #tpu.memory_space<vmem>>, %arg10: memref<1x1x128xf32, #tpu.memory_space<vmem>>, %arg11: memref<1x24x128xf32, #tpu.memory_space<vmem>>, %arg12: memref<24x640xf32, #tpu.memory_space<vmem>>) attributes {dimension_semantics = [#tpu.dimension_semantics<parallel>], iteration_bounds = array<i64: 2>, scalar_prefetch = 0 : i64, scratch_operands = 1 : i64, tpu.core_type = #tpu.core_type<tc>, window_params = [{transform_indices = @transform_0, window_bounds = array<i64: 1, 24, 24>}, {transform_indices = @transform_1, window_bounds = array<i64: 1, 24, 128>}, {transform_indices = @transform_2, window_bounds = array<i64: 1, 24, 1>}, {transform_indices = @transform_3, window_bounds = array<i64: 1, 24, 24>}, {transform_indices = @transform_4, window_bounds = array<i64: 1, 24, 128>}, {transform_indices = @transform_5, window_bounds = array<i64: 1, 24, 1>}, {transform_indices = @transform_6, window_bounds = array<i64: 1, 640, 128>}, {transform_indices = @transform_7, window_bounds = array<i64: 1, 1, 128>}, {transform_indices = @transform_8, window_bounds = array<i64: 1, 1, 128>}, {transform_indices = @transform_9, window_bounds = array<i64: 1, 1, 128>}, {transform_indices = @transform_10, window_bounds = array<i64: 1, 24, 128>}]} {
    %c0 = arith.constant 0 : index
    %c0_0 = arith.constant 0 : index
    %c0_1 = arith.constant 0 : index
    %0 = vector.load %arg1[%c0, %c0_0, %c0_1] : memref<1x24x24xf32, #tpu.memory_space<vmem>>, vector<1x24x24xf32>
    %1 = vector.shape_cast %0 : vector<1x24x24xf32> to vector<24x24xf32>
    %c0_2 = arith.constant 0 : index
    %c0_3 = arith.constant 0 : index
    %c0_4 = arith.constant 0 : index
    %2 = vector.load %arg2[%c0_2, %c0_3, %c0_4] : memref<1x24x128xf32, #tpu.memory_space<vmem>>, vector<1x24x128xf32>
    %3 = vector.shape_cast %2 : vector<1x24x128xf32> to vector<24x128xf32>
    %cst = arith.constant dense<0.000000e+00> : vector<24x128xf32>
    %4 = tpu.matmul %1, %3, %cst {dimension_numbers = #tpu.dot_dimension_numbers<[1], [0], [0], [1], [0, 0, 1, 1], [], []>} : vector<24x24xf32>, vector<24x128xf32>, vector<24x128xf32> -> vector<24x128xf32>
    %c0_5 = arith.constant 0 : index
    %c0_6 = arith.constant 0 : index
    %5 = vector.load %arg12[%c0_5, %c0_6] : memref<24x640xf32, #tpu.memory_space<vmem>>, vector<24x128xf32>
    tpu.vector_store %arg12[%c0_5, %c0_6], %4 {strides = array<i32>} : memref<24x640xf32, #tpu.memory_space<vmem>>, vector<24x128xf32>,
    %cst_7 = arith.constant dense<0.000000e+00> : vector<24x128xf32>
    %6 = tpu.matmul %1, %4, %cst_7 {dimension_numbers = #tpu.dot_dimension_numbers<[1], [0], [0], [1], [0, 0, 1, 1], [], []>} : vector<24x24xf32>, vector<24x128xf32>, vector<24x128xf32> -> vector<24x128xf32>
    %c0_8 = arith.constant 0 : index
    %c128 = arith.constant 128 : index
    %7 = vector.load %arg12[%c0_8, %c128] : memref<24x640xf32, #tpu.memory_space<vmem>>, vector<24x128xf32>
    tpu.vector_store %arg12[%c0_8, %c128], %6 {strides = array<i32>} : memref<24x640xf32, #tpu.memory_space<vmem>>, vector<24x128xf32>,
    %c0_9 = arith.constant 0 : index
    %c256 = arith.constant 256 : index
    %8 = vector.load %arg12[%c0_9, %c256] : memref<24x640xf32, #tpu.memory_space<vmem>>, vector<24x128xf32>
    tpu.vector_store %arg12[%c0_9, %c256], %3 {strides = array<i32>} : memref<24x640xf32, #tpu.memory_space<vmem>>, vector<24x128xf32>,
    %c0_10 = arith.constant 0 : index
    %c0_11 = arith.constant 0 : index
    %c0_12 = arith.constant 0 : index
    %9 = vector.load %arg3[%c0_10, %c0_11, %c0_12] : memref<1x24x1xf32, #tpu.memory_space<vmem>>, vector<1x24x1xf32>
    %10 = vector.shape_cast %9 : vector<1x24x1xf32> to vector<24x1xf32>
    %11 = vector.broadcast %10 : vector<24x1xf32> to vector<24x128xf32>
    %12 = arith.mulf %11, %3 : vector<24x128xf32>
    %c0_13 = arith.constant 0 : index
    %c384 = arith.constant 384 : index
    %13 = vector.load %arg12[%c0_13, %c384] : memref<24x640xf32, #tpu.memory_space<vmem>>, vector<24x128xf32>
    tpu.vector_store %arg12[%c0_13, %c384], %12 {strides = array<i32>} : memref<24x640xf32, #tpu.memory_space<vmem>>, vector<24x128xf32>,
    %c0_14 = arith.constant 0 : index
    %c0_15 = arith.constant 0 : index
    %c0_16 = arith.constant 0 : index
    %14 = vector.load %arg4[%c0_14, %c0_15, %c0_16] : memref<1x24x24xf32, #tpu.memory_space<vmem>>, vector<1x24x24xf32>
    %15 = vector.shape_cast %14 : vector<1x24x24xf32> to vector<24x24xf32>
    %c0_17 = arith.constant 0 : index
    %c0_18 = arith.constant 0 : index
    %c0_19 = arith.constant 0 : index
    %16 = vector.load %arg5[%c0_17, %c0_18, %c0_19] : memref<1x24x128xf32, #tpu.memory_space<vmem>>, vector<1x24x128xf32>
    %17 = vector.shape_cast %16 : vector<1x24x128xf32> to vector<24x128xf32>
    %cst_20 = arith.constant dense<0.000000e+00> : vector<24x128xf32>
    %18 = tpu.matmul %15, %17, %cst_20 {dimension_numbers = #tpu.dot_dimension_numbers<[1], [0], [0], [1], [0, 0, 1, 1], [], []>} : vector<24x24xf32>, vector<24x128xf32>, vector<24x128xf32> -> vector<24x128xf32>
    %c0_21 = arith.constant 0 : index
    %c512 = arith.constant 512 : index
    %19 = vector.load %arg12[%c0_21, %c512] : memref<24x640xf32, #tpu.memory_space<vmem>>, vector<24x128xf32>
    tpu.vector_store %arg12[%c0_21, %c512], %18 {strides = array<i32>} : memref<24x640xf32, #tpu.memory_space<vmem>>, vector<24x128xf32>,
    %c0_22 = arith.constant 0 : index
    %c0_23 = arith.constant 0 : index
    %20 = vector.load %arg12[%c0_22, %c0_23] : memref<24x640xf32, #tpu.memory_space<vmem>>, vector<24x640xf32>
    %c0_24 = arith.constant 0 : index
    %c0_25 = arith.constant 0 : index
    %c0_26 = arith.constant 0 : index
    %21 = vector.load %arg7[%c0_24, %c0_25, %c0_26] : memref<1x640x128xf32, #tpu.memory_space<vmem>>, vector<1x640x128xf32>
    %22 = vector.shape_cast %21 : vector<1x640x128xf32> to vector<640x128xf32>
    %cst_27 = arith.constant dense<0.000000e+00> : vector<24x128xf32>
    %23 = tpu.matmul %20, %22, %cst_27 {dimension_numbers = #tpu.dot_dimension_numbers<[1], [0], [0], [1], [0, 0, 1, 1], [], []>} : vector<24x640xf32>, vector<640x128xf32>, vector<24x128xf32> -> vector<24x128xf32>
    %c0_28 = arith.constant 0 : index
    %c0_29 = arith.constant 0 : index
    %c0_30 = arith.constant 0 : index
    %24 = vector.load %arg8[%c0_28, %c0_29, %c0_30] : memref<1x1x128xf32, #tpu.memory_space<vmem>>, vector<1x1x128xf32>
    %25 = vector.shape_cast %24 : vector<1x1x128xf32> to vector<1x128xf32>
    %26 = vector.broadcast %25 : vector<1x128xf32> to vector<24x128xf32>
    %27 = arith.addf %23, %26 : vector<24x128xf32>
    %28 = tpu.iota {dimensions = array<i32: 0>} : vector<24x1xi32>
    %c4_i32 = arith.constant 4 : i32
    %29 = vector.broadcast %c4_i32 : i32 to vector<24x1xi32>
    %30 = arith.cmpi slt, %28, %29 : vector<24x1xi32>
    %cst_31 = arith.constant 0.000000e+00 : f32
    %31 = vector.broadcast %cst_31 : f32 to vector<24x128xf32>
    %32 = arith.maximumf %27, %31 : vector<24x128xf32>
    %33 = vector.shape_cast %30 : vector<24x1xi1> to vector<24x1xi1>
    %34 = vector.broadcast %33 : vector<24x1xi1> to vector<24x128xi1>
    %35 = arith.select %34, %32, %27 : vector<24x128xi1>, vector<24x128xf32>
    %c0_32 = arith.constant 0 : index
    %c0_33 = arith.constant 0 : index
    %c0_34 = arith.constant 0 : index
    %36 = vector.load %arg6[%c0_32, %c0_33, %c0_34] : memref<1x24x1xf32, #tpu.memory_space<vmem>>, vector<1x24x1xf32>
    %37 = vector.shape_cast %36 : vector<1x24x1xf32> to vector<24x1xf32>
    %38 = vector.broadcast %37 : vector<24x1xf32> to vector<24x128xf32>
    %39 = arith.mulf %35, %38 : vector<24x128xf32>
    %cst_35 = arith.constant dense<0.000000e+00> : vector<128xf32>
    %40 = vector.multi_reduction <add>, %39, %cst_35 [0] : vector<24x128xf32> to vector<128xf32>
    %41 = vector.shape_cast %40 : vector<128xf32> to vector<1x128xf32>
    %42 = vector.broadcast %41 : vector<1x128xf32> to vector<24x128xf32>
    %43 = arith.subf %35, %42 : vector<24x128xf32>
    %44 = arith.mulf %43, %43 : vector<24x128xf32>
    %45 = vector.broadcast %37 : vector<24x1xf32> to vector<24x128xf32>
    %46 = arith.mulf %44, %45 : vector<24x128xf32>
    %cst_36 = arith.constant dense<0.000000e+00> : vector<128xf32>
    %47 = vector.multi_reduction <add>, %46, %cst_36 [0] : vector<24x128xf32> to vector<128xf32>
    %48 = vector.shape_cast %47 : vector<128xf32> to vector<1x128xf32>
    %cst_37 = arith.constant 9.99999974E-6 : f32
    %49 = vector.broadcast %cst_37 : f32 to vector<1x128xf32>
    %50 = arith.addf %48, %49 : vector<1x128xf32>
    %51 = math.rsqrt %50 : vector<1x128xf32>
    %52 = vector.broadcast %51 : vector<1x128xf32> to vector<24x128xf32>
    %53 = arith.mulf %43, %52 : vector<24x128xf32>
    %c0_38 = arith.constant 0 : index
    %c0_39 = arith.constant 0 : index
    %c0_40 = arith.constant 0 : index
    %54 = vector.load %arg9[%c0_38, %c0_39, %c0_40] : memref<1x1x128xf32, #tpu.memory_space<vmem>>, vector<1x1x128xf32>
    %55 = vector.shape_cast %54 : vector<1x1x128xf32> to vector<1x128xf32>
    %56 = vector.broadcast %55 : vector<1x128xf32> to vector<24x128xf32>
    %57 = arith.mulf %56, %53 : vector<24x128xf32>
    %c0_41 = arith.constant 0 : index
    %c0_42 = arith.constant 0 : index
    %c0_43 = arith.constant 0 : index
    %58 = vector.load %arg10[%c0_41, %c0_42, %c0_43] : memref<1x1x128xf32, #tpu.memory_space<vmem>>, vector<1x1x128xf32>
    %59 = vector.shape_cast %58 : vector<1x1x128xf32> to vector<1x128xf32>
    %60 = vector.broadcast %59 : vector<1x128xf32> to vector<24x128xf32>
    %61 = arith.addf %57, %60 : vector<24x128xf32>
    %c0_44 = arith.constant 0 : index
    %c0_45 = arith.constant 0 : index
    %c0_46 = arith.constant 0 : index
    %62 = vector.load %arg11[%c0_44, %c0_45, %c0_46] : memref<1x24x128xf32, #tpu.memory_space<vmem>>, vector<1x24x128xf32>
    %63 = vector.shape_cast %62 : vector<1x24x128xf32> to vector<24x128xf32>
    %64 = vector.shape_cast %61 : vector<24x128xf32> to vector<1x24x128xf32>
    tpu.vector_store %arg11[%c0_44, %c0_45, %c0_46], %64 {strides = array<i32>} : memref<1x24x128xf32, #tpu.memory_space<vmem>>, vector<1x24x128xf32>,
    return
  }
  func.func @transform_0(%arg0: i32) -> (i32, i32, i32) {
    %c0_i32 = arith.constant 0 : i32
    %c0_i32_0 = arith.constant 0 : i32
    %c0_i32_1 = arith.constant 0 : i32
    return %arg0, %c0_i32, %c0_i32_0 : i32, i32, i32
  }
  func.func @transform_1(%arg0: i32) -> (i32, i32, i32) {
    %c0_i32 = arith.constant 0 : i32
    %c0_i32_0 = arith.constant 0 : i32
    %c0_i32_1 = arith.constant 0 : i32
    return %arg0, %c0_i32, %c0_i32_0 : i32, i32, i32
  }
  func.func @transform_2(%arg0: i32) -> (i32, i32, i32) {
    %c0_i32 = arith.constant 0 : i32
    %c0_i32_0 = arith.constant 0 : i32
    %c0_i32_1 = arith.constant 0 : i32
    return %arg0, %c0_i32, %c0_i32_0 : i32, i32, i32
  }
  func.func @transform_3(%arg0: i32) -> (i32, i32, i32) {
    %c0_i32 = arith.constant 0 : i32
    %c0_i32_0 = arith.constant 0 : i32
    %c0_i32_1 = arith.constant 0 : i32
    return %arg0, %c0_i32, %c0_i32_0 : i32, i32, i32
  }
  func.func @transform_4(%arg0: i32) -> (i32, i32, i32) {
    %c0_i32 = arith.constant 0 : i32
    %c0_i32_0 = arith.constant 0 : i32
    %c0_i32_1 = arith.constant 0 : i32
    return %arg0, %c0_i32, %c0_i32_0 : i32, i32, i32
  }
  func.func @transform_5(%arg0: i32) -> (i32, i32, i32) {
    %c0_i32 = arith.constant 0 : i32
    %c0_i32_0 = arith.constant 0 : i32
    %c0_i32_1 = arith.constant 0 : i32
    return %arg0, %c0_i32, %c0_i32_0 : i32, i32, i32
  }
  func.func @transform_6(%arg0: i32) -> (i32, i32, i32) {
    %c0_i32 = arith.constant 0 : i32
    %c0_i32_0 = arith.constant 0 : i32
    %c0_i32_1 = arith.constant 0 : i32
    return %arg0, %c0_i32, %c0_i32_0 : i32, i32, i32
  }
  func.func @transform_7(%arg0: i32) -> (i32, i32, i32) {
    %c0_i32 = arith.constant 0 : i32
    %c0_i32_0 = arith.constant 0 : i32
    %c0_i32_1 = arith.constant 0 : i32
    return %arg0, %c0_i32, %c0_i32_0 : i32, i32, i32
  }
  func.func @transform_8(%arg0: i32) -> (i32, i32, i32) {
    %c0_i32 = arith.constant 0 : i32
    %c0_i32_0 = arith.constant 0 : i32
    %c0_i32_1 = arith.constant 0 : i32
    return %arg0, %c0_i32, %c0_i32_0 : i32, i32, i32
  }
  func.func @transform_9(%arg0: i32) -> (i32, i32, i32) {
    %c0_i32 = arith.constant 0 : i32
    %c0_i32_0 = arith.constant 0 : i32
    %c0_i32_1 = arith.constant 0 : i32
    return %arg0, %c0_i32, %c0_i32_0 : i32, i32, i32
  }
  func.func @transform_10(%arg0: i32) -> (i32, i32, i32) {
    %c0_i32 = arith.constant 0 : i32
    %c0_i32_0 = arith.constant 0 : i32
    %c0_i32_1 = arith.constant 0 : i32
    return %arg0, %c0_i32, %c0_i32_0 : i32, i32, i32
  }
}

</mosaic_0001>

<llo_original>
// kernel: lgcn_layer_forward.1
$region0: #{lgcn_layer_forward.1}
  #allocation0 [shape = 'u32[]', space=smem, size = 0x4, offset = 0x4, fixed_abs, tag = 'smem constant byte address 0x4 - core index']
  #allocation1 [shape = 'u32[72,128]{1,0:T(1,128)}', space=vmem, size = 0x9000, scoped, tag = 'internal scratch']
  #allocation2 [shape = 'f32[24,640]{1,0:T(8,128)}', space=vmem, size = 0xf000, scoped, tag = 'scratch operand']
  %s0 = inlined_call_operand.vmem [shape: f32[2,24,24], index: 0, kind: input, shape index: {}]
  %s1 = inlined_call_operand.vmem [shape: f32[2,24,128], index: 1, kind: input, shape index: {}]
  %s2 = inlined_call_operand.vmem [shape: f32[2,24,1], index: 2, kind: input, shape index: {}]
  %s3 = inlined_call_operand.vmem [shape: f32[2,24,24], index: 3, kind: input, shape index: {}]
  %s4 = inlined_call_operand.vmem [shape: f32[2,24,128], index: 4, kind: input, shape index: {}]
  %s5 = inlined_call_operand.vmem [shape: f32[2,24,1], index: 5, kind: input, shape index: {}]
  %s6 = inlined_call_operand.hbm [shape: f32[2,640,128], index: 6, kind: input, shape index: {}]
  %s7 = inlined_call_operand.vmem [shape: f32[2,1,128], index: 7, kind: input, shape index: {}]
  %s8 = inlined_call_operand.vmem [shape: f32[2,1,128], index: 8, kind: input, shape index: {}]
  %s9 = inlined_call_operand.vmem [shape: f32[2,1,128], index: 9, kind: input, shape index: {}]
  %s10 = inlined_call_operand.vmem [shape: f32[2,24,128], index: 10, kind: output, shape index: {}]
  %s11 = sld [smem:[#allocation0]]
  $region77: #{lgcn_layer_forward.1} parent=0
    _
  %s13 = ssub.s32 1, %s11
  %s14 = scalar_select 0, %s13, %s11
  $region1: #{lgcn_layer_forward.1} parent=0
    #allocation3 [shape = 'u8[655360]{0}', space=vmem, size = 0xa0000, scoped, tag = 'input window, operand 6']
    #allocation4 [shape = 's32[2]{0}', space=sflag, size = 0x8, scoped, tag = 'scoped memory for lgcn_layer_forward.1']
    %15 = vsyncpa [#allocation4], 0
    %s16 = scalar_lea.sflag [#allocation4], 1
    %17 = vsyncpa %s16, 0
    loop: start=0, step=1, limit=4
    $region2: #{lgcn_layer_forward.1} parent=1 // loop_pre_header
      _
    $region3: #{lgcn_layer_forward.1} parent=1 // loop_header
      %s19 = sphi 0, %s23
      %p20 = scmp.ge.s32.totalorder %s19, 4
      %s29 = sphi 0, %s31
      %s32 = sphi 0, %s29
      %s33 = sphi 0, %s32
      %s49 = sphi 0, %s33
      %s55 = sphi 0, %s57
      %s58 = sphi 0, %s55
      %s59 = sphi 0, %s58
      %s75 = sphi 0, %s59
      %s81 = sphi 0, %s83
      %s84 = sphi 0, %s81
      %s85 = sphi 0, %s84
      %s101 = sphi 0, %s85
      %s107 = sphi 0, %s109
      %s110 = sphi 0, %s107
      %s111 = sphi 0, %s110
      %s127 = sphi 0, %s111
      %s133 = sphi 0, %s135
      %s136 = sphi 0, %s133
      %s137 = sphi 0, %s136
      %s153 = sphi 0, %s137
      %s159 = sphi 0, %s161
      %s162 = sphi 0, %s159
      %s163 = sphi 0, %s162
      %s179 = sphi 0, %s163
      %s185 = sphi 0, %s187
      %s188 = sphi 0, %s185
      %s189 = sphi 0, %s188
      %s205 = sphi 0, %s189
      %s211 = sphi 0, %s213
      %s214 = sphi 0, %s211
      %s215 = sphi 0, %s214
      %s231 = sphi 0, %s215
      %s237 = sphi 0, %s239
      %s240 = sphi 0, %s237
      %s241 = sphi 0, %s240
      %s257 = sphi 0, %s241
      %s263 = sphi 0, %s265
      %s266 = sphi 0, %s263
      %s267 = sphi 0, %s266
      %s283 = sphi 0, %s267
      %s289 = sphi 0, %s291
      %s292 = sphi 0, %s289
      %s293 = sphi 0, %s292
      %s309 = sphi 0, %s293
    $region4: #{lgcn_layer_forward.1} parent=1 // loop_header_branch
      %22 = sbr.rel (%p20) target = $region8
    $region5: #{lgcn_layer_forward.1} parent=1 // loop_body
      %s24 = ssub.s32 %s19, 1
      %s25 = ssub.s32 %s19, 2
      %s26 = sadd.s32 %s19, 1
      %s27 = ssub.s32 %s19, %s26
      %p28 = scmp.eq.s32.totalorder %s27, 0
      %s30 = sadd.s32 %s29, 1
      %s31 = scalar_select %p28, %s29, %s30
      %p34 = pneg %p28
      %p35 = scmp.eq.s32.totalorder %s19, 1
      %p36 = por %p34, %p35
      %p37 = scmp.ne.s32.totalorder %s29, %s32
      %p38 = scmp.eq.s32.totalorder %s19, 0
      %p39 = por %p37, %p38
      %p40 = scmp.ne.s32.totalorder %s29, %s32
      %p41 = scmp.eq.s32.totalorder %s24, 1
      %p42 = por %p40, %p41
      %p43 = scmp.ne.s32.totalorder %s32, %s33
      %p44 = scmp.eq.s32.totalorder %s24, 0
      %p45 = por %p43, %p44
      %p46 = scmp.ne.s32.totalorder %s32, %s33
      %p47 = scmp.eq.s32.totalorder %s25, 1
      %p48 = por %p46, %p47
      %p50 = scmp.ne.s32.totalorder %s33, %s49
      %p51 = scmp.eq.s32.totalorder %s25, 0
      %p52 = por %p50, %p51
      %s53 = ssub.s32 %s19, %s26
      %p54 = scmp.eq.s32.totalorder %s53, 0
      %s56 = sadd.s32 %s55, 1
      %s57 = scalar_select %p54, %s55, %s56
      %p60 = pneg %p54
      %p61 = scmp.eq.s32.totalorder %s19, 1
      %p62 = por %p60, %p61
      %p63 = scmp.ne.s32.totalorder %s55, %s58
      %p64 = scmp.eq.s32.totalorder %s19, 0
      %p65 = por %p63, %p64
      %p66 = scmp.ne.s32.totalorder %s55, %s58
      %p67 = scmp.eq.s32.totalorder %s24, 1
      %p68 = por %p66, %p67
      %p69 = scmp.ne.s32.totalorder %s58, %s59
      %p70 = scmp.eq.s32.totalorder %s24, 0
      %p71 = por %p69, %p70
      %p72 = scmp.ne.s32.totalorder %s58, %s59
      %p73 = scmp.eq.s32.totalorder %s25, 1
      %p74 = por %p72, %p73
      %p76 = scmp.ne.s32.totalorder %s59, %s75
      %p77 = scmp.eq.s32.totalorder %s25, 0
      %p78 = por %p76, %p77
      %s79 = ssub.s32 %s19, %s26
      %p80 = scmp.eq.s32.totalorder %s79, 0
      %s82 = sadd.s32 %s81, 1
      %s83 = scalar_select %p80, %s81, %s82
      %p86 = pneg %p80
      %p87 = scmp.eq.s32.totalorder %s19, 1
      %p88 = por %p86, %p87
      %p89 = scmp.ne.s32.totalorder %s81, %s84
      %p90 = scmp.eq.s32.totalorder %s19, 0
      %p91 = por %p89, %p90
      %p92 = scmp.ne.s32.totalorder %s81, %s84
      %p93 = scmp.eq.s32.totalorder %s24, 1
      %p94 = por %p92, %p93
      %p95 = scmp.ne.s32.totalorder %s84, %s85
      %p96 = scmp.eq.s32.totalorder %s24, 0
      %p97 = por %p95, %p96
      %p98 = scmp.ne.s32.totalorder %s84, %s85
      %p99 = scmp.eq.s32.totalorder %s25, 1
      %p100 = por %p98, %p99
      %p102 = scmp.ne.s32.totalorder %s85, %s101
      %p103 = scmp.eq.s32.totalorder %s25, 0
      %p104 = por %p102, %p103
      %s105 = ssub.s32 %s19, %s26
      %p106 = scmp.eq.s32.totalorder %s105, 0
      %s108 = sadd.s32 %s107, 1
      %s109 = scalar_select %p106, %s107, %s108
      %p112 = pneg %p106
      %p113 = scmp.eq.s32.totalorder %s19, 1
      %p114 = por %p112, %p113
      %p115 = scmp.ne.s32.totalorder %s107, %s110
      %p116 = scmp.eq.s32.totalorder %s19, 0
      %p117 = por %p115, %p116
      %p118 = scmp.ne.s32.totalorder %s107, %s110
      %p119 = scmp.eq.s32.totalorder %s24, 1
      %p120 = por %p118, %p119
      %p121 = scmp.ne.s32.totalorder %s110, %s111
      %p122 = scmp.eq.s32.totalorder %s24, 0
      %p123 = por %p121, %p122
      %p124 = scmp.ne.s32.totalorder %s110, %s111
      %p125 = scmp.eq.s32.totalorder %s25, 1
      %p126 = por %p124, %p125
      %p128 = scmp.ne.s32.totalorder %s111, %s127
      %p129 = scmp.eq.s32.totalorder %s25, 0
      %p130 = por %p128, %p129
      %s131 = ssub.s32 %s19, %s26
      %p132 = scmp.eq.s32.totalorder %s131, 0
      %s134 = sadd.s32 %s133, 1
      %s135 = scalar_select %p132, %s133, %s134
      %p138 = pneg %p132
      %p139 = scmp.eq.s32.totalorder %s19, 1
      %p140 = por %p138, %p139
      %p141 = scmp.ne.s32.totalorder %s133, %s136
      %p142 = scmp.eq.s32.totalorder %s19, 0
      %p143 = por %p141, %p142
      %p144 = scmp.ne.s32.totalorder %s133, %s136
      %p145 = scmp.eq.s32.totalorder %s24, 1
      %p146 = por %p144, %p145
      %p147 = scmp.ne.s32.totalorder %s136, %s137
      %p148 = scmp.eq.s32.totalorder %s24, 0
      %p149 = por %p147, %p148
      %p150 = scmp.ne.s32.totalorder %s136, %s137
      %p151 = scmp.eq.s32.totalorder %s25, 1
      %p152 = por %p150, %p151
      %p154 = scmp.ne.s32.totalorder %s137, %s153
      %p155 = scmp.eq.s32.totalorder %s25, 0
      %p156 = por %p154, %p155
      %s157 = ssub.s32 %s19, %s26
      %p158 = scmp.eq.s32.totalorder %s157, 0
      %s160 = sadd.s32 %s159, 1
      %s161 = scalar_select %p158, %s159, %s160
      %p164 = pneg %p158
      %p165 = scmp.eq.s32.totalorder %s19, 1
      %p166 = por %p164, %p165
      %p167 = scmp.ne.s32.totalorder %s159, %s162
      %p168 = scmp.eq.s32.totalorder %s19, 0
      %p169 = por %p167, %p168
      %p170 = scmp.ne.s32.totalorder %s159, %s162
      %p171 = scmp.eq.s32.totalorder %s24, 1
      %p172 = por %p170, %p171
      %p173 = scmp.ne.s32.totalorder %s162, %s163
      %p174 = scmp.eq.s32.totalorder %s24, 0
      %p175 = por %p173, %p174
      %p176 = scmp.ne.s32.totalorder %s162, %s163
      %p177 = scmp.eq.s32.totalorder %s25, 1
      %p178 = por %p176, %p177
      %p180 = scmp.ne.s32.totalorder %s163, %s179
      %p181 = scmp.eq.s32.totalorder %s25, 0
      %p182 = por %p180, %p181
      %s183 = ssub.s32 %s19, %s26
      %p184 = scmp.eq.s32.totalorder %s183, 0
      %s186 = sadd.s32 %s185, 1
      %s187 = scalar_select %p184, %s185, %s186
      %p190 = pneg %p184
      %p191 = scmp.eq.s32.totalorder %s19, 1
      %p192 = por %p190, %p191
      %p193 = scmp.ne.s32.totalorder %s185, %s188
      %p194 = scmp.eq.s32.totalorder %s19, 0
      %p195 = por %p193, %p194
      %p196 = scmp.ne.s32.totalorder %s185, %s188
      %p197 = scmp.eq.s32.totalorder %s24, 1
      %p198 = por %p196, %p197
      %p199 = scmp.ne.s32.totalorder %s188, %s189
      %p200 = scmp.eq.s32.totalorder %s24, 0
      %p201 = por %p199, %p200
      %p202 = scmp.ne.s32.totalorder %s188, %s189
      %p203 = scmp.eq.s32.totalorder %s25, 1
      %p204 = por %p202, %p203
      %p206 = scmp.ne.s32.totalorder %s189, %s205
      %p207 = scmp.eq.s32.totalorder %s25, 0
      %p208 = por %p206, %p207
      %s209 = ssub.s32 %s19, %s26
      %p210 = scmp.eq.s32.totalorder %s209, 0
      %s212 = sadd.s32 %s211, 1
      %s213 = scalar_select %p210, %s211, %s212
      %p216 = pneg %p210
      %p217 = scmp.eq.s32.totalorder %s19, 1
      %p218 = por %p216, %p217
      %p219 = scmp.ne.s32.totalorder %s211, %s214
      %p220 = scmp.eq.s32.totalorder %s19, 0
      %p221 = por %p219, %p220
      %p222 = scmp.ne.s32.totalorder %s211, %s214
      %p223 = scmp.eq.s32.totalorder %s24, 1
      %p224 = por %p222, %p223
      %p225 = scmp.ne.s32.totalorder %s214, %s215
      %p226 = scmp.eq.s32.totalorder %s24, 0
      %p227 = por %p225, %p226
      %p228 = scmp.ne.s32.totalorder %s214, %s215
      %p229 = scmp.eq.s32.totalorder %s25, 1
      %p230 = por %p228, %p229
      %p232 = scmp.ne.s32.totalorder %s215, %s231
      %p233 = scmp.eq.s32.totalorder %s25, 0
      %p234 = por %p232, %p233
      %s235 = ssub.s32 %s19, %s26
      %p236 = scmp.eq.s32.totalorder %s235, 0
      %s238 = sadd.s32 %s237, 1
      %s239 = scalar_select %p236, %s237, %s238
      %p242 = pneg %p236
      %p243 = scmp.eq.s32.totalorder %s19, 1
      %p244 = por %p242, %p243
      %p245 = scmp.ne.s32.totalorder %s237, %s240
      %p246 = scmp.eq.s32.totalorder %s19, 0
      %p247 = por %p245, %p246
      %p248 = scmp.ne.s32.totalorder %s237, %s240
      %p249 = scmp.eq.s32.totalorder %s24, 1
      %p250 = por %p248, %p249
      %p251 = scmp.ne.s32.totalorder %s240, %s241
      %p252 = scmp.eq.s32.totalorder %s24, 0
      %p253 = por %p251, %p252
      %p254 = scmp.ne.s32.totalorder %s240, %s241
      %p255 = scmp.eq.s32.totalorder %s25, 1
      %p256 = por %p254, %p255
      %p258 = scmp.ne.s32.totalorder %s241, %s257
      %p259 = scmp.eq.s32.totalorder %s25, 0
      %p260 = por %p258, %p259
      %s261 = ssub.s32 %s19, %s26
      %p262 = scmp.eq.s32.totalorder %s261, 0
      %s264 = sadd.s32 %s263, 1
      %s265 = scalar_select %p262, %s263, %s264
      %p268 = pneg %p262
      %p269 = scmp.eq.s32.totalorder %s19, 1
      %p270 = por %p268, %p269
      %p271 = scmp.ne.s32.totalorder %s263, %s266
      %p272 = scmp.eq.s32.totalorder %s19, 0
      %p273 = por %p271, %p272
      %p274 = scmp.ne.s32.totalorder %s263, %s266
      %p275 = scmp.eq.s32.totalorder %s24, 1
      %p276 = por %p274, %p275
      %p277 = scmp.ne.s32.totalorder %s266, %s267
      %p278 = scmp.eq.s32.totalorder %s24, 0
      %p279 = por %p277, %p278
      %p280 = scmp.ne.s32.totalorder %s266, %s267
      %p281 = scmp.eq.s32.totalorder %s25, 1
      %p282 = por %p280, %p281
      %p284 = scmp.ne.s32.totalorder %s267, %s283
      %p285 = scmp.eq.s32.totalorder %s25, 0
      %p286 = por %p284, %p285
      %s287 = ssub.s32 %s19, %s26
      %p288 = scmp.eq.s32.totalorder %s287, 0
      %s290 = sadd.s32 %s289, 1
      %s291 = scalar_select %p288, %s289, %s290
      %p294 = pneg %p288
      %p295 = scmp.eq.s32.totalorder %s19, 1
      %p296 = por %p294, %p295
      %p297 = scmp.ne.s32.totalorder %s289, %s292
      %p298 = scmp.eq.s32.totalorder %s19, 0
      %p299 = por %p297, %p298
      %p300 = scmp.ne.s32.totalorder %s289, %s292
      %p301 = scmp.eq.s32.totalorder %s24, 1
      %p302 = por %p300, %p301
      %p303 = scmp.ne.s32.totalorder %s292, %s293
      %p304 = scmp.eq.s32.totalorder %s24, 0
      %p305 = por %p303, %p304
      %p306 = scmp.ne.s32.totalorder %s292, %s293
      %p307 = scmp.eq.s32.totalorder %s25, 1
      %p308 = por %p306, %p307
      %p310 = scmp.ne.s32.totalorder %s293, %s309
      %p311 = scmp.eq.s32.totalorder %s25, 0
      %p312 = por %p310, %p311
      %p313 = scmp.le.s32.totalorder 1, %s19
      %p314 = scmp.lt.s32.totalorder %s19, 3
      %p315 = pnand %p313, %p314
      %p316 = pneg %p315
      // Predicated region
      $region9: #{lgcn_layer_forward.1} parent=5 // pred_check
        _
      $region10: #{lgcn_layer_forward.1} parent=5 // pred_check_branch
        %318 = sbr.rel (%p315) target = $region12
      $region11: #{lgcn_layer_forward.1} parent=5 // pred_region
        %s319 = ssub.s32 %s19, 1
      $region12: #{lgcn_layer_forward.1} parent=5 // pred_fallthru
        _
      %p320 = scmp.lt.s32.totalorder %s19, 2
      // Predicated region
      $region13: #{lgcn_layer_forward.1} parent=5 // pred_check
        %p321 = pneg %p320
      $region14: #{lgcn_layer_forward.1} parent=5 // pred_check_branch
        %323 = sbr.rel (%p321) target = $region16
      $region15: #{lgcn_layer_forward.1} parent=5 // pred_region
        // Predicated region
        $region17: #{lgcn_layer_forward.1} parent=15 // pred_check
          %p324 = pneg %p39
        $region18: #{lgcn_layer_forward.1} parent=15 // pred_check_branch
          %326 = sbr.rel (%p324) target = $region20
        $region19: #{lgcn_layer_forward.1} parent=15 // pred_region
          %p327 = scmp.lt.s32.totalorder %s19, 1
          %s328 = scalar_select %p327, %s19, 1
          %s329 = smul.addr %s328, 3
          %s330 = smul.addr %s329, 8
          %s331 = scalar_lea.vmem %s0, %s330
        $region20: #{lgcn_layer_forward.1} parent=15 // pred_fallthru
          _
        // Predicated region
        $region21: #{lgcn_layer_forward.1} parent=15 // pred_check
          %p332 = pneg %p65
        $region22: #{lgcn_layer_forward.1} parent=15 // pred_check_branch
          %334 = sbr.rel (%p332) target = $region24
        $region23: #{lgcn_layer_forward.1} parent=15 // pred_region
          %p335 = scmp.lt.s32.totalorder %s19, 1
          %s336 = scalar_select %p335, %s19, 1
          %s337 = smul.addr %s336, 3
          %s338 = smul.addr %s337, 8
          %s339 = scalar_lea.vmem %s1, %s338
        $region24: #{lgcn_layer_forward.1} parent=15 // pred_fallthru
          _
        // Predicated region
        $region25: #{lgcn_layer_forward.1} parent=15 // pred_check
          %p340 = pneg %p91
        $region26: #{lgcn_layer_forward.1} parent=15 // pred_check_branch
          %342 = sbr.rel (%p340) target = $region28
        $region27: #{lgcn_layer_forward.1} parent=15 // pred_region
          %p343 = scmp.lt.s32.totalorder %s19, 1
          %s344 = scalar_select %p343, %s19, 1
          %s345 = smul.addr %s344, 3
          %s346 = smul.addr %s345, 8
          %s347 = scalar_lea.vmem %s2, %s346
        $region28: #{lgcn_layer_forward.1} parent=15 // pred_fallthru
          _
        // Predicated region
        $region29: #{lgcn_layer_forward.1} parent=15 // pred_check
          %p348 = pneg %p117
        $region30: #{lgcn_layer_forward.1} parent=15 // pred_check_branch
          %350 = sbr.rel (%p348) target = $region32
        $region31: #{lgcn_layer_forward.1} parent=15 // pred_region
          %p351 = scmp.lt.s32.totalorder %s19, 1
          %s352 = scalar_select %p351, %s19, 1
          %s353 = smul.addr %s352, 3
          %s354 = smul.addr %s353, 8
          %s355 = scalar_lea.vmem %s3, %s354
        $region32: #{lgcn_layer_forward.1} parent=15 // pred_fallthru
          _
        // Predicated region
        $region33: #{lgcn_layer_forward.1} parent=15 // pred_check
          %p356 = pneg %p143
        $region34: #{lgcn_layer_forward.1} parent=15 // pred_check_branch
          %358 = sbr.rel (%p356) target = $region36
        $region35: #{lgcn_layer_forward.1} parent=15 // pred_region
          %p359 = scmp.lt.s32.totalorder %s19, 1
          %s360 = scalar_select %p359, %s19, 1
          %s361 = smul.addr %s360, 3
          %s362 = smul.addr %s361, 8
          %s363 = scalar_lea.vmem %s4, %s362
        $region36: #{lgcn_layer_forward.1} parent=15 // pred_fallthru
          _
        // Predicated region
        $region37: #{lgcn_layer_forward.1} parent=15 // pred_check
          %p364 = pneg %p169
        $region38: #{lgcn_layer_forward.1} parent=15 // pred_check_branch
          %366 = sbr.rel (%p364) target = $region40
        $region39: #{lgcn_layer_forward.1} parent=15 // pred_region
          %p367 = scmp.lt.s32.totalorder %s19, 1
          %s368 = scalar_select %p367, %s19, 1
          %s369 = smul.addr %s368, 3
          %s370 = smul.addr %s369, 8
          %s371 = scalar_lea.vmem %s5, %s370
        $region40: #{lgcn_layer_forward.1} parent=15 // pred_fallthru
          _
        // Predicated region
        $region41: #{lgcn_layer_forward.1} parent=15 // pred_check
          %p372 = pneg %p195
        $region42: #{lgcn_layer_forward.1} parent=15 // pred_check_branch
          %374 = sbr.rel (%p372) target = $region44
        $region43: #{lgcn_layer_forward.1} parent=15 // pred_region
          %s375 = sand.u32 %s185, 1
          %s376 = scalar_lea.sflag [#allocation4], %s375
          %s377 = sand.u32 %s185, 1
          %s378 = smul.addr %s377, 640
          %s379 = scalar_lea.vmem [#allocation3], %s378
          %381 = vsyncadd %s376, 0
          %s382 = smul.addr %s19, 80
          %s383 = smul.addr %s382, 8
          %s384 = scalar_lea.hbm %s6, %s383
          %s385 = sshll.u32 %s384, 4
          %s386 = int_to_ptr.hbm [resolvable:$true] %s385
          %s387 = sshll.u32 %s379, 4
          %s388 = int_to_ptr.vmem [resolvable:$true] %s387
          %393 = dma.hbm_to_vmem [thread:$0]  %s386, 10240, %s388, %s376, 128, 128, 8
        $region44: #{lgcn_layer_forward.1} parent=15 // pred_fallthru
          _
        // Predicated region
        $region45: #{lgcn_layer_forward.1} parent=15 // pred_check
          %p394 = pneg %p221
        $region46: #{lgcn_layer_forward.1} parent=15 // pred_check_branch
          %396 = sbr.rel (%p394) target = $region48
        $region47: #{lgcn_layer_forward.1} parent=15 // pred_region
          %p397 = scmp.lt.s32.totalorder %s19, 1
          %s398 = scalar_select %p397, %s19, 1
          %s399 = scalar_lea.vmem %s7, %s398
        $region48: #{lgcn_layer_forward.1} parent=15 // pred_fallthru
          _
        // Predicated region
        $region49: #{lgcn_layer_forward.1} parent=15 // pred_check
          %p400 = pneg %p247
        $region50: #{lgcn_layer_forward.1} parent=15 // pred_check_branch
          %402 = sbr.rel (%p400) target = $region52
        $region51: #{lgcn_layer_forward.1} parent=15 // pred_region
          %p403 = scmp.lt.s32.totalorder %s19, 1
          %s404 = scalar_select %p403, %s19, 1
          %s405 = scalar_lea.vmem %s8, %s404
        $region52: #{lgcn_layer_forward.1} parent=15 // pred_fallthru
          _
        // Predicated region
        $region53: #{lgcn_layer_forward.1} parent=15 // pred_check
          %p406 = pneg %p273
        $region54: #{lgcn_layer_forward.1} parent=15 // pred_check_branch
          %408 = sbr.rel (%p406) target = $region56
        $region55: #{lgcn_layer_forward.1} parent=15 // pred_region
          %p409 = scmp.lt.s32.totalorder %s19, 1
          %s410 = scalar_select %p409, %s19, 1
          %s411 = scalar_lea.vmem %s9, %s410
        $region56: #{lgcn_layer_forward.1} parent=15 // pred_fallthru
          _
      $region16: #{lgcn_layer_forward.1} parent=5 // pred_fallthru
        _
      %p412 = scmp.le.s32.totalorder 1, %s19
      %p413 = scmp.lt.s32.totalorder %s19, 3
      %p414 = pnand %p412, %p413
      %p415 = pneg %p414
      // Predicated region
      $region57: #{lgcn_layer_forward.1} parent=5 // pred_check
        _
      $region58: #{lgcn_layer_forward.1} parent=5 // pred_check_branch
        %417 = sbr.rel (%p414) target = $region60
      $region59: #{lgcn_layer_forward.1} parent=5 // pred_region
        %s418 = ssub.s32 %s19, 1
        %s419 = sand.u32 %s188, 1
        %s420 = scalar_lea.sflag [#allocation4], %s419
        %s421 = sand.u32 %s188, 1
        %s422 = smul.addr %s421, 640
        %s423 = scalar_lea.vmem [#allocation3], %s422
        // Predicated region
        $region61: #{lgcn_layer_forward.1} parent=59 // pred_check
          %p424 = pneg %p201
        $region62: #{lgcn_layer_forward.1} parent=59 // pred_check_branch
          %426 = sbr.rel (%p424) target = $region64
        $region63: #{lgcn_layer_forward.1} parent=59 // pred_region
          %428 = dma.done %s420, 10240
        $region64: #{lgcn_layer_forward.1} parent=59 // pred_fallthru
          _
        %p429 = scmp.lt.s32.totalorder %s24, 1
        %s430 = scalar_select %p429, %s24, 1
        %s431 = smul.addr %s430, 3
        %s432 = smul.addr %s431, 8
        %s433 = scalar_lea.vmem %s0, %s432
        %p434 = pneg %p45
        %p435 = pneg %p42
        %p436 = scmp.lt.s32.totalorder %s24, 1
        %s437 = scalar_select %p436, %s24, 1
        %s438 = smul.addr %s437, 3
        %s439 = smul.addr %s438, 8
        %s440 = scalar_lea.vmem %s1, %s439
        %p441 = pneg %p71
        %p442 = pneg %p68
        %p443 = scmp.lt.s32.totalorder %s24, 1
        %s444 = scalar_select %p443, %s24, 1
        %s445 = smul.addr %s444, 3
        %s446 = smul.addr %s445, 8
        %s447 = scalar_lea.vmem %s2, %s446
        %p448 = pneg %p97
        %p449 = pneg %p94
        %p450 = scmp.lt.s32.totalorder %s24, 1
        %s451 = scalar_select %p450, %s24, 1
        %s452 = smul.addr %s451, 3
        %s453 = smul.addr %s452, 8
        %s454 = scalar_lea.vmem %s3, %s453
        %p455 = pneg %p123
        %p456 = pneg %p120
        %p457 = scmp.lt.s32.totalorder %s24, 1
        %s458 = scalar_select %p457, %s24, 1
        %s459 = smul.addr %s458, 3
        %s460 = smul.addr %s459, 8
        %s461 = scalar_lea.vmem %s4, %s460
        %p462 = pneg %p149
        %p463 = pneg %p146
        %p464 = scmp.lt.s32.totalorder %s24, 1
        %s465 = scalar_select %p464, %s24, 1
        %s466 = smul.addr %s465, 3
        %s467 = smul.addr %s466, 8
        %s468 = scalar_lea.vmem %s5, %s467
        %p469 = pneg %p175
        %p470 = pneg %p172
        %s471 = sand.u32 %s188, 1
        %s472 = scalar_lea.sflag [#allocation4], %s471
        %s473 = sand.u32 %s188, 1
        %s474 = smul.addr %s473, 640
        %s475 = scalar_lea.vmem [#allocation3], %s474
        %p476 = pneg %p201
        %p477 = pneg %p198
        %p478 = scmp.lt.s32.totalorder %s24, 1
        %s479 = scalar_select %p478, %s24, 1
        %s480 = scalar_lea.vmem %s7, %s479
        %p481 = pneg %p227
        %p482 = pneg %p224
        %p483 = scmp.lt.s32.totalorder %s24, 1
        %s484 = scalar_select %p483, %s24, 1
        %s485 = scalar_lea.vmem %s8, %s484
        %p486 = pneg %p253
        %p487 = pneg %p250
        %p488 = scmp.lt.s32.totalorder %s24, 1
        %s489 = scalar_select %p488, %s24, 1
        %s490 = scalar_lea.vmem %s9, %s489
        %p491 = pneg %p279
        %p492 = pneg %p276
        %p493 = pneg %p305
        %p494 = pneg %p302
        %p495 = scmp.lt.s32.totalorder %s24, 1
        %s496 = scalar_select %p495, %s24, 1
        %s497 = smul.addr %s496, 3
        %s498 = smul.addr %s497, 8
        %s499 = scalar_lea.vmem %s10, %s498
        %p500 = scmp.lt.s32.totalorder %s24, 1
        %s501 = scalar_select %p500, %s24, 1
        %s502 = smul.addr %s501, 3
        %s503 = smul.addr %s502, 8
        %s504 = scalar_lea.vmem %s0, %s503
        %p505 = scmp.lt.s32.totalorder %s24, 1
        %s506 = scalar_select %p505, %s24, 1
        %s507 = smul.addr %s506, 3
        %s508 = smul.addr %s507, 8
        %s509 = scalar_lea.vmem %s1, %s508
        %p510 = scmp.lt.s32.totalorder %s24, 1
        %s511 = scalar_select %p510, %s24, 1
        %s512 = smul.addr %s511, 3
        %s513 = smul.addr %s512, 8
        %s514 = scalar_lea.vmem %s2, %s513
        %p515 = scmp.lt.s32.totalorder %s24, 1
        %s516 = scalar_select %p515, %s24, 1
        %s517 = smul.addr %s516, 3
        %s518 = smul.addr %s517, 8
        %s519 = scalar_lea.vmem %s3, %s518
        %p520 = scmp.lt.s32.totalorder %s24, 1
        %s521 = scalar_select %p520, %s24, 1
        %s522 = smul.addr %s521, 3
        %s523 = smul.addr %s522, 8
        %s524 = scalar_lea.vmem %s4, %s523
        %p525 = scmp.lt.s32.totalorder %s24, 1
        %s526 = scalar_select %p525, %s24, 1
        %s527 = smul.addr %s526, 3
        %s528 = smul.addr %s527, 8
        %s529 = scalar_lea.vmem %s5, %s528
        %p530 = scmp.lt.s32.totalorder %s24, 1
        %s531 = scalar_select %p530, %s24, 1
        %s532 = scalar_lea.vmem %s7, %s531
        %p533 = scmp.lt.s32.totalorder %s24, 1
        %s534 = scalar_select %p533, %s24, 1
        %s535 = scalar_lea.vmem %s8, %s534
        %p536 = scmp.lt.s32.totalorder %s24, 1
        %s537 = scalar_select %p536, %s24, 1
        %s538 = scalar_lea.vmem %s9, %s537
        %p539 = scmp.lt.s32.totalorder %s24, 1
        %s540 = scalar_select %p539, %s24, 1
        %s541 = smul.addr %s540, 3
        %s542 = smul.addr %s541, 8
        %s543 = scalar_lea.vmem %s10, %s542
        %v544 = vld [vmem:[%s504] sm:$0xff]
        %v545 = vld [vmem:[%s504 + $0x8] sm:$0xff]
        %v546 = vld [vmem:[%s504 + $0x10] sm:$0xff]
        %v547 = vld [vmem:[%s509] sm:$0xff]
        %v548 = vld [vmem:[%s509 + $0x8] sm:$0xff]
        %v549 = vld [vmem:[%s509 + $0x10] sm:$0xff]
        %vm550 = vcmask 195584
        %v552 = vsel %vm550, %v544, 0
        %v555 = vsel %vm550, %v545, 0
        %v558 = vsel %vm550, %v546, 0
        %560 = vmatpush.msra.mxu0 0.0
        %561 = vmatpush.msra.mxu0 0.0
        %562 = vmatpush.msra.mxu0 0.0
        %563 = vmatpush.msra.mxu0 0.0
        %564 = vmatpush.msra.mxu0 0.0
        %565 = vmatpush.msra.mxu0 0.0
        %566 = vmatpush.msra.mxu0 0.0
        %567 = vmatpush.msra.mxu0 0.0
        %568 = vmatpush.msra.mxu0 0.0
        %569 = vmatpush.msra.mxu0 0.0
        %570 = vmatpush.msra.mxu0 0.0
        %571 = vmatpush.msra.mxu0 0.0
        %572 = vmatpush.msra.mxu0 0.0
        %573 = vmatpush.msra.mxu0 %v549
        %574 = vmatpush.msra.mxu0 %v548
        %575 = vmatpush.msra.mxu0 %v547
        %576 = vmatmul.f32.gmra.mxu0 %v552
        %v577 = vpop.f32.mrf.mxu0
        %v578 = vadd.f32 0.0, %v577
        %579 = vmatmul.f32.gmra.mxu0 %v555
        %v580 = vpop.f32.mrf.mxu0
        %v581 = vadd.f32 0.0, %v580
        %582 = vmatmul.f32.gmra.mxu0 %v558
        %v583 = vpop.f32.mrf.mxu0
        %v584 = vadd.f32 0.0, %v583
        %585 = vdwg.mxu0
        %586 = vst [vmem:[#allocation2] sm:$0xff] %v578
        %587 = vst [vmem:[#allocation2 + $0x28] sm:$0xff] %v581
        %588 = vst [vmem:[#allocation2 + $0x50] sm:$0xff] %v584
        %589 = vmatpush.msra.mxu0 0.0
        %590 = vmatpush.msra.mxu0 0.0
        %591 = vmatpush.msra.mxu0 0.0
        %592 = vmatpush.msra.mxu0 0.0
        %593 = vmatpush.msra.mxu0 0.0
        %594 = vmatpush.msra.mxu0 0.0
        %595 = vmatpush.msra.mxu0 0.0
        %596 = vmatpush.msra.mxu0 0.0
        %597 = vmatpush.msra.mxu0 0.0
        %598 = vmatpush.msra.mxu0 0.0
        %599 = vmatpush.msra.mxu0 0.0
        %600 = vmatpush.msra.mxu0 0.0
        %601 = vmatpush.msra.mxu0 0.0
        %602 = vmatpush.msra.mxu0 %v584
        %603 = vmatpush.msra.mxu0 %v581
        %604 = vmatpush.msra.mxu0 %v578
        %605 = vmatmul.f32.gmra.mxu0 %v552
        %v606 = vpop.f32.mrf.mxu0
        %v607 = vadd.f32 0.0, %v606
        %608 = vmatmul.f32.gmra.mxu0 %v555
        %v609 = vpop.f32.mrf.mxu0
        %v610 = vadd.f32 0.0, %v609
        %611 = vmatmul.f32.gmra.mxu0 %v558
        %v612 = vpop.f32.mrf.mxu0
        %v613 = vadd.f32 0.0, %v612
        %614 = vdwg.mxu0
        %615 = vst [vmem:[#allocation2 + $0x8] sm:$0xff] %v607
        %616 = vst [vmem:[#allocation2 + $0x30] sm:$0xff] %v610
        %617 = vst [vmem:[#allocation2 + $0x58] sm:$0xff] %v613
        %618 = vst [vmem:[#allocation2 + $0x10] sm:$0xff] %v547
        %619 = vst [vmem:[#allocation2 + $0x38] sm:$0xff] %v548
        %620 = vst [vmem:[#allocation2 + $0x60] sm:$0xff] %v549
        %v621 = vld [vmem:[%s514] sm:$0xff]
        %v622 = vld [vmem:[%s514 + $0x8] sm:$0xff]
        %v623 = vld [vmem:[%s514 + $0x10] sm:$0xff]
        %625 = vset.pattern.permute.xlu0 0
        %626 = vperm.xlu0 %625, %v621
        %v627 = vpop.permute.xlu0 %626
        %630 = vset.pattern.permute.xlu0 0
        %631 = vperm.xlu0 %630, %v622
        %v632 = vpop.permute.xlu0 %631
        %635 = vset.pattern.permute.xlu0 0
        %636 = vperm.xlu0 %635, %v623
        %v637 = vpop.permute.xlu0 %636
        %v639 = vmul.f32 %v627, %v547
        %v640 = vmul.f32 %v632, %v548
        %v641 = vmul.f32 %v637, %v549
        %642 = vst [vmem:[#allocation2 + $0x18] sm:$0xff] %v639
        %643 = vst [vmem:[#allocation2 + $0x40] sm:$0xff] %v640
        %644 = vst [vmem:[#allocation2 + $0x68] sm:$0xff] %v641
        %v645 = vld [vmem:[%s519] sm:$0xff]
        %v646 = vld [vmem:[%s519 + $0x8] sm:$0xff]
        %v647 = vld [vmem:[%s519 + $0x10] sm:$0xff]
        %v648 = vld [vmem:[%s524] sm:$0xff]
        %v649 = vld [vmem:[%s524 + $0x8] sm:$0xff]
        %v650 = vld [vmem:[%s524 + $0x10] sm:$0xff]
        %v652 = vsel %vm550, %v645, 0
        %v655 = vsel %vm550, %v646, 0
        %v658 = vsel %vm550, %v647, 0
        %660 = vmatpush.msra.mxu0 0.0
        %661 = vmatpush.msra.mxu0 0.0
        %662 = vmatpush.msra.mxu0 0.0
        %663 = vmatpush.msra.mxu0 0.0
        %664 = vmatpush.msra.mxu0 0.0
        %665 = vmatpush.msra.mxu0 0.0
        %666 = vmatpush.msra.mxu0 0.0
        %667 = vmatpush.msra.mxu0 0.0
        %668 = vmatpush.msra.mxu0 0.0
        %669 = vmatpush.msra.mxu0 0.0
        %670 = vmatpush.msra.mxu0 0.0
        %671 = vmatpush.msra.mxu0 0.0
        %672 = vmatpush.msra.mxu0 0.0
        %673 = vmatpush.msra.mxu0 %v650
        %674 = vmatpush.msra.mxu0 %v649
        %675 = vmatpush.msra.mxu0 %v648
        %676 = vmatmul.f32.gmra.mxu0 %v652
        %v677 = vpop.f32.mrf.mxu0
        %v678 = vadd.f32 0.0, %v677
        %679 = vmatmul.f32.gmra.mxu0 %v655
        %v680 = vpop.f32.mrf.mxu0
        %v681 = vadd.f32 0.0, %v680
        %682 = vmatmul.f32.gmra.mxu0 %v658
        %v683 = vpop.f32.mrf.mxu0
        %v684 = vadd.f32 0.0, %v683
        %685 = vdwg.mxu0
        %686 = vst [vmem:[#allocation2 + $0x20] sm:$0xff] %v678
        %687 = vst [vmem:[#allocation2 + $0x48] sm:$0xff] %v681
        %688 = vst [vmem:[#allocation2 + $0x70] sm:$0xff] %v684
        %v689 = vld [vmem:[#allocation2] sm:$0xff]
        %v690 = vld [vmem:[#allocation2 + $0x8] sm:$0xff]
        %v691 = vld [vmem:[#allocation2 + $0x10] sm:$0xff]
        %v692 = vld [vmem:[#allocation2 + $0x18] sm:$0xff]
        %v693 = vld [vmem:[#allocation2 + $0x20] sm:$0xff]
        %v694 = vld [vmem:[#allocation2 + $0x28] sm:$0xff]
        %v695 = vld [vmem:[#allocation2 + $0x30] sm:$0xff]
        %v696 = vld [vmem:[#allocation2 + $0x38] sm:$0xff]
        %v697 = vld [vmem:[#allocation2 + $0x40] sm:$0xff]
        %v698 = vld [vmem:[#allocation2 + $0x48] sm:$0xff]
        %v699 = vld [vmem:[#allocation2 + $0x50] sm:$0xff]
        %v700 = vld [vmem:[#allocation2 + $0x58] sm:$0xff]
        %v701 = vld [vmem:[#allocation2 + $0x60] sm:$0xff]
        %v702 = vld [vmem:[#allocation2 + $0x68] sm:$0xff]
        %v703 = vld [vmem:[#allocation2 + $0x70] sm:$0xff]
        %v704 = vld [vmem:[%s423] sm:$0xff]
        %v705 = vld [vmem:[%s423 + $0x8] sm:$0xff]
        %v706 = vld [vmem:[%s423 + $0x10] sm:$0xff]
        %v707 = vld [vmem:[%s423 + $0x18] sm:$0xff]
        %v708 = vld [vmem:[%s423 + $0x20] sm:$0xff]
        %v709 = vld [vmem:[%s423 + $0x28] sm:$0xff]
        %v710 = vld [vmem:[%s423 + $0x30] sm:$0xff]
        %v711 = vld [vmem:[%s423 + $0x38] sm:$0xff]
        %v712 = vld [vmem:[%s423 + $0x40] sm:$0xff]
        %v713 = vld [vmem:[%s423 + $0x48] sm:$0xff]
        %v714 = vld [vmem:[%s423 + $0x50] sm:$0xff]
        %v715 = vld [vmem:[%s423 + $0x58] sm:$0xff]
        %v716 = vld [vmem:[%s423 + $0x60] sm:$0xff]
        %v717 = vld [vmem:[%s423 + $0x68] sm:$0xff]
        %v718 = vld [vmem:[%s423 + $0x70] sm:$0xff]
        %v719 = vld [vmem:[%s423 + $0x78] sm:$0xff]
        %v720 = vld [vmem:[%s423 + $0x80] sm:$0xff]
        %v721 = vld [vmem:[%s423 + $0x88] sm:$0xff]
        %v722 = vld [vmem:[%s423 + $0x90] sm:$0xff]
        %v723 = vld [vmem:[%s423 + $0x98] sm:$0xff]
        %v724 = vld [vmem:[%s423 + $0xa0] sm:$0xff]
        %v725 = vld [vmem:[%s423 + $0xa8] sm:$0xff]
        %v726 = vld [vmem:[%s423 + $0xb0] sm:$0xff]
        %v727 = vld [vmem:[%s423 + $0xb8] sm:$0xff]
        %v728 = vld [vmem:[%s423 + $0xc0] sm:$0xff]
        %v729 = vld [vmem:[%s423 + $0xc8] sm:$0xff]
        %v730 = vld [vmem:[%s423 + $0xd0] sm:$0xff]
        %v731 = vld [vmem:[%s423 + $0xd8] sm:$0xff]
        %v732 = vld [vmem:[%s423 + $0xe0] sm:$0xff]
        %v733 = vld [vmem:[%s423 + $0xe8] sm:$0xff]
        %v734 = vld [vmem:[%s423 + $0xf0] sm:$0xff]
        %v735 = vld [vmem:[%s423 + $0xf8] sm:$0xff]
        %v736 = vld [vmem:[%s423 + $0x100] sm:$0xff]
        %v737 = vld [vmem:[%s423 + $0x108] sm:$0xff]
        %v738 = vld [vmem:[%s423 + $0x110] sm:$0xff]
        %v739 = vld [vmem:[%s423 + $0x118] sm:$0xff]
        %v740 = vld [vmem:[%s423 + $0x120] sm:$0xff]
        %v741 = vld [vmem:[%s423 + $0x128] sm:$0xff]
        %v742 = vld [vmem:[%s423 + $0x130] sm:$0xff]
        %v743 = vld [vmem:[%s423 + $0x138] sm:$0xff]
        %v744 = vld [vmem:[%s423 + $0x140] sm:$0xff]
        %v745 = vld [vmem:[%s423 + $0x148] sm:$0xff]
        %v746 = vld [vmem:[%s423 + $0x150] sm:$0xff]
        %v747 = vld [vmem:[%s423 + $0x158] sm:$0xff]
        %v748 = vld [vmem:[%s423 + $0x160] sm:$0xff]
        %v749 = vld [vmem:[%s423 + $0x168] sm:$0xff]
        %v750 = vld [vmem:[%s423 + $0x170] sm:$0xff]
        %v751 = vld [vmem:[%s423 + $0x178] sm:$0xff]
        %v752 = vld [vmem:[%s423 + $0x180] sm:$0xff]
        %v753 = vld [vmem:[%s423 + $0x188] sm:$0xff]
        %v754 = vld [vmem:[%s423 + $0x190] sm:$0xff]
        %v755 = vld [vmem:[%s423 + $0x198] sm:$0xff]
        %v756 = vld [vmem:[%s423 + $0x1a0] sm:$0xff]
        %v757 = vld [vmem:[%s423 + $0x1a8] sm:$0xff]
        %v758 = vld [vmem:[%s423 + $0x1b0] sm:$0xff]
        %v759 = vld [vmem:[%s423 + $0x1b8] sm:$0xff]
        %v760 = vld [vmem:[%s423 + $0x1c0] sm:$0xff]
        %v761 = vld [vmem:[%s423 + $0x1c8] sm:$0xff]
        %v762 = vld [vmem:[%s423 + $0x1d0] sm:$0xff]
        %v763 = vld [vmem:[%s423 + $0x1d8] sm:$0xff]
        %v764 = vld [vmem:[%s423 + $0x1e0] sm:$0xff]
        %v765 = vld [vmem:[%s423 + $0x1e8] sm:$0xff]
        %v766 = vld [vmem:[%s423 + $0x1f0] sm:$0xff]
        %v767 = vld [vmem:[%s423 + $0x1f8] sm:$0xff]
        %v768 = vld [vmem:[%s423 + $0x200] sm:$0xff]
        %v769 = vld [vmem:[%s423 + $0x208] sm:$0xff]
        %v770 = vld [vmem:[%s423 + $0x210] sm:$0xff]
        %v771 = vld [vmem:[%s423 + $0x218] sm:$0xff]
        %v772 = vld [vmem:[%s423 + $0x220] sm:$0xff]
        %v773 = vld [vmem:[%s423 + $0x228] sm:$0xff]
        %v774 = vld [vmem:[%s423 + $0x230] sm:$0xff]
        %v775 = vld [vmem:[%s423 + $0x238] sm:$0xff]
        %v776 = vld [vmem:[%s423 + $0x240] sm:$0xff]
        %v777 = vld [vmem:[%s423 + $0x248] sm:$0xff]
        %v778 = vld [vmem:[%s423 + $0x250] sm:$0xff]
        %v779 = vld [vmem:[%s423 + $0x258] sm:$0xff]
        %v780 = vld [vmem:[%s423 + $0x260] sm:$0xff]
        %v781 = vld [vmem:[%s423 + $0x268] sm:$0xff]
        %v782 = vld [vmem:[%s423 + $0x270] sm:$0xff]
        %v783 = vld [vmem:[%s423 + $0x278] sm:$0xff]
        %v784 = vld [vmem:[%s532] sm:$0x1]
        %v786 = vperm.slane %v784, 0
        %788 = vmatpush.msra.mxu0 %v719
        %789 = vmatpush.msra.mxu0 %v718
        %790 = vmatpush.msra.mxu0 %v717
        %791 = vmatpush.msra.mxu0 %v716
        %792 = vmatpush.msra.mxu0 %v715
        %793 = vmatpush.msra.mxu0 %v714
        %794 = vmatpush.msra.mxu0 %v713
        %795 = vmatpush.msra.mxu0 %v712
        %796 = vmatpush.msra.mxu0 %v711
        %797 = vmatpush.msra.mxu0 %v710
        %798 = vmatpush.msra.mxu0 %v709
        %799 = vmatpush.msra.mxu0 %v708
        %800 = vmatpush.msra.mxu0 %v707
        %801 = vmatpush.msra.mxu0 %v706
        %802 = vmatpush.msra.mxu0 %v705
        %803 = vmatpush.msra.mxu0 %v704
        %804 = vmatmul.f32.gmra.mxu0 %v689
        %v805 = vpop.f32.mrf.mxu0
        %v806 = vadd.f32 %v786, %v805
        %807 = vmatmul.f32.gmra.mxu0 %v694
        %v808 = vpop.f32.mrf.mxu0
        %v809 = vadd.f32 %v786, %v808
        %810 = vmatmul.f32.gmra.mxu0 %v699
        %v811 = vpop.f32.mrf.mxu0
        %v812 = vadd.f32 %v786, %v811
        %813 = vdwg.mxu0
        %814 = vmatpush.msra.mxu0 %v735
        %815 = vmatpush.msra.mxu0 %v734
        %816 = vmatpush.msra.mxu0 %v733
        %817 = vmatpush.msra.mxu0 %v732
        %818 = vmatpush.msra.mxu0 %v731
        %819 = vmatpush.msra.mxu0 %v730
        %820 = vmatpush.msra.mxu0 %v729
        %821 = vmatpush.msra.mxu0 %v728
        %822 = vmatpush.msra.mxu0 %v727
        %823 = vmatpush.msra.mxu0 %v726
        %824 = vmatpush.msra.mxu0 %v725
        %825 = vmatpush.msra.mxu0 %v724
        %826 = vmatpush.msra.mxu0 %v723
        %827 = vmatpush.msra.mxu0 %v722
        %828 = vmatpush.msra.mxu0 %v721
        %829 = vmatpush.msra.mxu0 %v720
        %830 = vmatmul.f32.gmra.mxu0 %v690
        %v831 = vpop.f32.mrf.mxu0
        %v832 = vadd.f32 %v806, %v831
        %833 = vmatmul.f32.gmra.mxu0 %v695
        %v834 = vpop.f32.mrf.mxu0
        %v835 = vadd.f32 %v809, %v834
        %836 = vmatmul.f32.gmra.mxu0 %v700
        %v837 = vpop.f32.mrf.mxu0
        %v838 = vadd.f32 %v812, %v837
        %839 = vdwg.mxu0
        %840 = vmatpush.msra.mxu0 %v751
        %841 = vmatpush.msra.mxu0 %v750
        %842 = vmatpush.msra.mxu0 %v749
        %843 = vmatpush.msra.mxu0 %v748
        %844 = vmatpush.msra.mxu0 %v747
        %845 = vmatpush.msra.mxu0 %v746
        %846 = vmatpush.msra.mxu0 %v745
        %847 = vmatpush.msra.mxu0 %v744
        %848 = vmatpush.msra.mxu0 %v743
        %849 = vmatpush.msra.mxu0 %v742
        %850 = vmatpush.msra.mxu0 %v741
        %851 = vmatpush.msra.mxu0 %v740
        %852 = vmatpush.msra.mxu0 %v739
        %853 = vmatpush.msra.mxu0 %v738
        %854 = vmatpush.msra.mxu0 %v737
        %855 = vmatpush.msra.mxu0 %v736
        %856 = vmatmul.f32.gmra.mxu0 %v691
        %v857 = vpop.f32.mrf.mxu0
        %v858 = vadd.f32 %v832, %v857
        %859 = vmatmul.f32.gmra.mxu0 %v696
        %v860 = vpop.f32.mrf.mxu0
        %v861 = vadd.f32 %v835, %v860
        %862 = vmatmul.f32.gmra.mxu0 %v701
        %v863 = vpop.f32.mrf.mxu0
        %v864 = vadd.f32 %v838, %v863
        %865 = vdwg.mxu0
        %866 = vmatpush.msra.mxu0 %v767
        %867 = vmatpush.msra.mxu0 %v766
        %868 = vmatpush.msra.mxu0 %v765
        %869 = vmatpush.msra.mxu0 %v764
        %870 = vmatpush.msra.mxu0 %v763
        %871 = vmatpush.msra.mxu0 %v762
        %872 = vmatpush.msra.mxu0 %v761
        %873 = vmatpush.msra.mxu0 %v760
        %874 = vmatpush.msra.mxu0 %v759
        %875 = vmatpush.msra.mxu0 %v758
        %876 = vmatpush.msra.mxu0 %v757
        %877 = vmatpush.msra.mxu0 %v756
        %878 = vmatpush.msra.mxu0 %v755
        %879 = vmatpush.msra.mxu0 %v754
        %880 = vmatpush.msra.mxu0 %v753
        %881 = vmatpush.msra.mxu0 %v752
        %882 = vmatmul.f32.gmra.mxu0 %v692
        %v883 = vpop.f32.mrf.mxu0
        %v884 = vadd.f32 %v858, %v883
        %885 = vmatmul.f32.gmra.mxu0 %v697
        %v886 = vpop.f32.mrf.mxu0
        %v887 = vadd.f32 %v861, %v886
        %888 = vmatmul.f32.gmra.mxu0 %v702
        %v889 = vpop.f32.mrf.mxu0
        %v890 = vadd.f32 %v864, %v889
        %891 = vdwg.mxu0
        %892 = vmatpush.msra.mxu0 %v783
        %893 = vmatpush.msra.mxu0 %v782
        %894 = vmatpush.msra.mxu0 %v781
        %895 = vmatpush.msra.mxu0 %v780
        %896 = vmatpush.msra.mxu0 %v779
        %897 = vmatpush.msra.mxu0 %v778
        %898 = vmatpush.msra.mxu0 %v777
        %899 = vmatpush.msra.mxu0 %v776
        %900 = vmatpush.msra.mxu0 %v775
        %901 = vmatpush.msra.mxu0 %v774
        %902 = vmatpush.msra.mxu0 %v773
        %903 = vmatpush.msra.mxu0 %v772
        %904 = vmatpush.msra.mxu0 %v771
        %905 = vmatpush.msra.mxu0 %v770
        %906 = vmatpush.msra.mxu0 %v769
        %907 = vmatpush.msra.mxu0 %v768
        %908 = vmatmul.f32.gmra.mxu0 %v693
        %v909 = vpop.f32.mrf.mxu0
        %v910 = vadd.f32 %v884, %v909
        %911 = vmatmul.f32.gmra.mxu0 %v698
        %v912 = vpop.f32.mrf.mxu0
        %v913 = vadd.f32 %v887, %v912
        %914 = vmatmul.f32.gmra.mxu0 %v703
        %v915 = vpop.f32.mrf.mxu0
        %v916 = vadd.f32 %v890, %v915
        %917 = vdwg.mxu0
        %v918 = vlaneseq
        %v919 = vshrl.u32 %v918, 7
        %v920 = vadd.s32 %v919, 8
        %v921 = vadd.s32 %v919, 16
        %vm922 = vcmp.lt.s32.totalorder %v919, 4
        %vm923 = vcmp.lt.s32.totalorder %v920, 4
        %vm924 = vcmp.lt.s32.totalorder %v921, 4
        %v925 = vmax.f32 %v910, 0.0
        %v926 = vmax.f32 %v913, 0.0
        %v927 = vmax.f32 %v916, 0.0
        %v928 = vsel %vm922, 1, 0
        %v929 = vsel %vm923, 1, 0
        %v930 = vsel %vm924, 1, 0
        %vm931 = vcmp.eq.s32.totalorder %v928, 1
        %vm932 = vcmp.eq.s32.totalorder %v929, 1
        %vm933 = vcmp.eq.s32.totalorder %v930, 1
        %v934 = vsel %vm931, %v925, %v910
        %v935 = vsel %vm932, %v926, %v913
        %v936 = vsel %vm933, %v927, %v916
        %v937 = vld [vmem:[%s529] sm:$0xff]
        %v938 = vld [vmem:[%s529 + $0x8] sm:$0xff]
        %v939 = vld [vmem:[%s529 + $0x10] sm:$0xff]
        %941 = vset.pattern.permute.xlu0 0
        %942 = vperm.xlu0 %941, %v937
        %v943 = vpop.permute.xlu0 %942
        %946 = vset.pattern.permute.xlu0 0
        %947 = vperm.xlu0 %946, %v938
        %v948 = vpop.permute.xlu0 %947
        %951 = vset.pattern.permute.xlu0 0
        %952 = vperm.xlu0 %951, %v939
        %v953 = vpop.permute.xlu0 %952
        %v955 = vmul.f32 %v934, %v943
        %v956 = vmul.f32 %v935, %v948
        %v957 = vmul.f32 %v936, %v953
        %v958 = vadd.f32 %v955, %v956
        %v959 = vadd.f32 %v958, %v957
        %v960 = vrot.slane %v959, 4
        %v961 = vadd.f32 %v959, %v960
        %v962 = vrot.slane %v961, 2
        %v963 = vadd.f32 %v961, %v962
        %v964 = vrot.slane %v963, 1
        %v965 = vadd.f32 %v963, %v964
        %v966 = vsub.f32 %v934, %v965
        %v967 = vsub.f32 %v935, %v965
        %v968 = vsub.f32 %v936, %v965
        %v969 = vmul.f32 %v966, %v966
        %v970 = vmul.f32 %v967, %v967
        %v971 = vmul.f32 %v968, %v968
        %v972 = vmul.f32 %v969, %v943
        %v973 = vmul.f32 %v970, %v948
        %v974 = vmul.f32 %v971, %v953
        %v975 = vadd.f32 %v972, %v973
        %v976 = vadd.f32 %v975, %v974
        %v977 = vrot.slane %v976, 4
        %v978 = vadd.f32 %v976, %v977
        %v979 = vrot.slane %v978, 2
        %v980 = vadd.f32 %v978, %v979
        %v981 = vrot.slane %v980, 1
        %v982 = vadd.f32 %v980, %v981
        %v983 = vadd.f32 %v982, 1e-05
        %v984 = vrsqrt.pop %v983
        %v985 = vmul.f32 %v984, %v983
        %v986 = vmul.f32 %v985, %v984
        %v987 = vmul.f32 0.5, %v986
        %v988 = vsub.f32 1.5, %v987
        %v989 = vmul.f32 %v984, %v988
        %vm990 = vweird.f32 %v983
        %vm991 = vweird.f32 %v984
        %vm992 = vmor %vm990, %vm991
        %v993 = vsel %vm992, %v984, %v989
        %v994 = vmul.f32 %v966, %v993
        %v995 = vmul.f32 %v967, %v993
        %v996 = vmul.f32 %v968, %v993
        %v997 = vld [vmem:[%s535] sm:$0x1]
        %v999 = vperm.slane %v997, 0
        %v1001 = vmul.f32 %v999, %v994
        %v1002 = vmul.f32 %v999, %v995
        %v1003 = vmul.f32 %v999, %v996
        %v1004 = vld [vmem:[%s538] sm:$0x1]
        %v1006 = vperm.slane %v1004, 0
        %v1008 = vadd.f32 %v1001, %v1006
        %v1009 = vadd.f32 %v1002, %v1006
        %v1010 = vadd.f32 %v1003, %v1006
        %1011 = vst [vmem:[%s543] sm:$0xff] %v1008
        %1012 = vst [vmem:[%s543 + $0x8] sm:$0xff] %v1009
        %1013 = vst [vmem:[%s543 + $0x10] sm:$0xff] %v1010
        %p1014 = scmp.lt.s32.totalorder %s24, 1
        %s1015 = scalar_select %p1014, %s24, 1
        %s1016 = smul.addr %s1015, 3
        %s1017 = smul.addr %s1016, 8
        %s1018 = scalar_lea.vmem %s10, %s1017
        // Predicated region
        $region65: #{lgcn_layer_forward.1} parent=59 // pred_check
          %p1019 = pneg %p302
        $region66: #{lgcn_layer_forward.1} parent=59 // pred_check_branch
          %1021 = sbr.rel (%p1019) target = $region68
        $region67: #{lgcn_layer_forward.1} parent=59 // pred_region
          _
        $region68: #{lgcn_layer_forward.1} parent=59 // pred_fallthru
          _
      $region60: #{lgcn_layer_forward.1} parent=5 // pred_fallthru
        _
      %p1022 = scmp.le.s32.totalorder 2, %s19
      // Predicated region
      $region69: #{lgcn_layer_forward.1} parent=5 // pred_check
        %p1023 = pneg %p1022
      $region70: #{lgcn_layer_forward.1} parent=5 // pred_check_branch
        %1025 = sbr.rel (%p1023) target = $region72
      $region71: #{lgcn_layer_forward.1} parent=5 // pred_region
        %s1026 = ssub.s32 %s19, 2
        // Predicated region
        $region73: #{lgcn_layer_forward.1} parent=71 // pred_check
          %p1027 = pneg %p308
        $region74: #{lgcn_layer_forward.1} parent=71 // pred_check_branch
          %1029 = sbr.rel (%p1027) target = $region76
        $region75: #{lgcn_layer_forward.1} parent=71 // pred_region
          %p1030 = scmp.lt.s32.totalorder %s25, 1
          %s1031 = scalar_select %p1030, %s25, 1
          %s1032 = smul.addr %s1031, 3
          %s1033 = smul.addr %s1032, 8
          %s1034 = scalar_lea.vmem %s10, %s1033
        $region76: #{lgcn_layer_forward.1} parent=71 // pred_fallthru
          _
      $region72: #{lgcn_layer_forward.1} parent=5 // pred_fallthru
        _
    $region6: #{lgcn_layer_forward.1} parent=1 // loop_footer
      %s23 = sadd.s32 1, %s19
    $region7: #{lgcn_layer_forward.1} parent=1 // loop_footer_branch
      %18 = sbr.rel target = $region3
    $region8: #{lgcn_layer_forward.1} parent=1 // loop_exit
      _
    %1035 = vsyncpa [#allocation4], 1
    %s1036 = scalar_lea.sflag [#allocation4], 1
    %1037 = vsyncpa %s1036, 1

</llo_original>
